<compile_context>
chip_gen: v5e
topology: v5e:2x2
jax: 0.10.0
libtpu: 0.0.40
codegen_flags: <defaults>
</compile_context>

<pallas_src>
import math

import jax
import jax.numpy as jnp
from jax.experimental import pallas as pl
from jax.experimental.pallas import tpu as pltpu


# ----------------------------- Pallas kernel -------------------------------


def _mix_kernel(x_ref, w_ref, o_ref):
    """(tm, K) @ (K, M) -> (tm, M) with f32 accumulation on the MXU."""
    o_ref[...] = jnp.dot(
        x_ref[...], w_ref[...], preferred_element_type=jnp.float32
    ).astype(o_ref.dtype)


def _round_up(x, m):
    return ((x + m - 1) // m) * m


def _mix_rows(x2d, w2d, *, tm=512):
    """x2d: (N, K), w2d: (K, M) -> (N, M) via a row-tiled Pallas matmul."""
    n, k = x2d.shape
    m = int(w2d.shape[1])
    tm_eff = min(tm, max(8, _round_up(n, 8)))
    grid = (pl.cdiv(n, tm_eff),)

    return pl.pallas_call(
        _mix_kernel,
        out_shape=jax.ShapeDtypeStruct((n, m), x2d.dtype),
        grid_spec=pltpu.PrefetchScalarGridSpec(
            num_scalar_prefetch=0,
            grid=grid,
            in_specs=[pl.BlockSpec((tm_eff, k), lambda i: (i, 0)),
                      pl.BlockSpec((k, m), lambda i: (0, 0))],
            out_specs=pl.BlockSpec((tm_eff, m), lambda i: (i, 0)),
        ),
        compiler_params=pltpu.CompilerParams(
            dimension_semantics=("parallel",)),
    )(x2d, w2d)


# --------------------------- weight transforms ------------------------------


def _interleave_complex_weight(w):
    """(2, t_in, t_out) complex weight -> (2*t_in, 2*t_out) real matrix that
    maps (re, im)-interleaved input rows to (re, im)-interleaved output rows.

        W2[2i,   2j]   =  w_re[i, j]
        W2[2i,   2j+1] =  w_im[i, j]
        W2[2i+1, 2j]   = -w_im[i, j]
        W2[2i+1, 2j+1] =  w_re[i, j]
    """
    wr, wi = w[0], w[1]
    t_in, t_out = wr.shape
    top = jnp.stack([wr, wi], axis=-1).reshape(t_in, 2 * t_out)    # rows 2i
    bot = jnp.stack([-wi, wr], axis=-1).reshape(t_in, 2 * t_out)   # rows 2i+1
    return jnp.stack([top, bot], axis=1).reshape(2 * t_in, 2 * t_out)


def _block_diag(mats):
    rows = sum(int(m.shape[0]) for m in mats)
    cols = sum(int(m.shape[1]) for m in mats)
    out = jnp.zeros((rows, cols), dtype=mats[0].dtype)
    r = c = 0
    for m in mats:
        out = out.at[r:r + m.shape[0], c:c + m.shape[1]].set(m)
        r += int(m.shape[0])
        c += int(m.shape[1])
    return out


# ------------------------------ forward path --------------------------------


def mix_rep(rep, weights, real=False, *, tm=512):
    """Mix a list of scalar-rep parts with per-part weights (forward pass)."""
    if not rep:
        return []

    leads, xs2d, ws2d, out_cols, tau_outs = [], [], [], [], []
    for part, w in zip(rep, weights):
        if real:
            *lead, t_in = part.shape
            x2d = part.reshape(math.prod(lead), t_in)
            w2 = w
            t_out = int(w.shape[-1])
            out_cols.append(t_out)
        else:
            *lead, t_in, two = part.shape
            assert two == 2
            x2d = part.reshape(math.prod(lead), 2 * t_in)   # free reshape
            w2 = _interleave_complex_weight(w)
            t_out = int(w.shape[-1])
            out_cols.append(2 * t_out)
        leads.append(tuple(lead))
        xs2d.append(x2d)
        ws2d.append(w2)
        tau_outs.append(t_out)

    def unflatten(o2d, lead, t_out):
        if real:
            return o2d.reshape(*lead, t_out)
        return o2d.reshape(*lead, t_out, 2)

    same_lead = all(l == leads[0] for l in leads)
    if same_lead and len(rep) > 1:
        # Single fused call: concatenate channel axes, block-diagonal weight.
        x = jnp.concatenate(xs2d, axis=-1)
        wbd = _block_diag(ws2d)
        out = _mix_rows(x, wbd, tm=tm)
        results, off = [], 0
        for lead, cols, t_out in zip(leads, out_cols, tau_outs):
            results.append(unflatten(out[:, off:off + cols], lead, t_out))
            off += cols
        return results

    # Fallback: one call per part (still a single fused matmul per part).
    return [unflatten(_mix_rows(x, w2, tm=tm), lead, t_out)
            for x, w2, lead, t_out in zip(xs2d, ws2d, leads, tau_outs)]


# ------------------------------ weight init ----------------------------------


def init_mix_reps_weights(tau_in, tau_out, weight_init='randn', real=False,
                          gain=1, key=None, dtype=jnp.float32):
    """Deterministic synthetic init matching the module's weight shapes."""
    if key is None:
        key = jax.random.PRNGKey(0)
    keys = jax.random.split(key, len(tau_in))
    weights = []
    for k, (t1, t2) in zip(keys, zip(tau_in, tau_out)):
        shape = (t1, t2) if real else (2, t1, t2)
        if weight_init == 'randn':
            w = gain * jax.random.normal(k, shape, dtype=dtype)
        elif weight_init == 'rand':
            w = gain * (2.0 * jax.random.uniform(k, shape, dtype=dtype) - 1.0)
        else:
            raise ValueError('unknown weight_init: {}'.format(weight_init))
        weights.append(w)
    return weights


class MixRepsScalar:
    """JAX/Pallas port of cormorant's MixRepsScalar (forward pass only)."""

    def __init__(self, tau_in, tau_out, weight_init='randn', real=False,
                 gain=1, key=None, dtype=jnp.float32):
        tau_in = list(tau_in)
        while not tau_in[-1]:
            tau_in.pop()
        if isinstance(tau_out, int):
            tau_out = [tau_out] * len(tau_in)
        else:
            tau_out = list(tau_out)
            while not tau_out[-1]:
                tau_out.pop()
        self.tau_in = list(tau_in)
        self.tau_out = list(tau_out)
        self.real = real
        self.cat_dim = -1 if real else -2
        self.weights = init_mix_reps_weights(
            self.tau_in, self.tau_out, weight_init, real=real, gain=gain,
            key=key, dtype=dtype)

    def __call__(self, rep):
        assert [int(part.shape[self.cat_dim]) for part in rep] == self.tau_in, (
            'Input rep must have same type as initialized tau! rep: {} tau: {}'
            .format([int(part.shape[self.cat_dim]) for part in rep],
                    self.tau_in))
        return mix_rep(rep, self.weights, real=self.real)


# ------------------------------ reference -----------------------------------


def _ref_mix_rep(rep, weights, real=False):
    if real:
        return [jnp.matmul(part, w) for part, w in zip(rep, weights)]
    out = []
    for part, w in zip(rep, weights):
        pr, pi = part[..., 0], part[..., 1]
        o_re = jnp.matmul(pr, w[0]) - jnp.matmul(pi, w[1])
        o_im = jnp.matmul(pr, w[1]) + jnp.matmul(pi, w[0])
        out.append(jnp.stack([o_re, o_im], axis=-1))
    return out


# -------------------------------- main ---------------------------------------


if __name__ == "__main__":
    key = jax.random.PRNGKey(0)
    k_w, k_r0, k_r1, k_wr, k_s0, k_s1 = jax.random.split(key, 6)

    # Small shapes: batch=2, atoms=8; two scalar "levels" with tau_in=[4, 6].
    batch, atoms = 2, 8
    tau_in = [4, 6]
    tau_out = 8  # int -> broadcast to [8, 8]

    # ---- complex (default) path ----
    rep = [
        jax.random.normal(k_r0, (batch, atoms, tau_in[0], 2), dtype=jnp.float32),
        jax.random.normal(k_r1, (batch, atoms, tau_in[1], 2), dtype=jnp.float32),
    ]
    module = MixRepsScalar(tau_in, tau_out, weight_init='randn', real=False,
                           gain=1, key=k_w)
    out = module(rep)
    out = [jax.block_until_ready(o) for o in out]
    ref = _ref_mix_rep(rep, module.weights, real=False)
    for o, r in zip(out, ref):
        assert o.shape == r.shape
        assert jnp.allclose(o, r, atol=1e-5, rtol=1e-5)

    # ---- real path ----
    rep_r = [
        jax.random.normal(k_s0, (batch, atoms, tau_in[0]), dtype=jnp.float32),
        jax.random.normal(k_s1, (batch, atoms, tau_in[1]), dtype=jnp.float32),
    ]
    module_r = MixRepsScalar(tau_in, tau_out, weight_init='rand', real=True,
                             gain=1, key=k_wr)
    out_r = module_r(rep_r)
    out_r = [jax.block_until_ready(o) for o in out_r]
    ref_r = _ref_mix_rep(rep_r, module_r.weights, real=True)
    for o, r in zip(out_r, ref_r):
        assert o.shape == r.shape
        assert jnp.allclose(o, r, atol=1e-5, rtol=1e-5)

    print("KERNEL_OK")
</pallas_src>

<mosaic_0001>
module attributes {stable_mosaic.version = 11 : i64} {
  func.func @_mix_kernel(%arg0: i32, %arg1: memref<16x20xf32, #tpu.memory_space<vmem>>, %arg2: memref<20x32xf32, #tpu.memory_space<vmem>>, %arg3: memref<16x32xf32, #tpu.memory_space<vmem>>) attributes {dimension_semantics = [#tpu.dimension_semantics<parallel>], iteration_bounds = array<i64: 1>, scalar_prefetch = 0 : i64, scratch_operands = 0 : i64, tpu.core_type = #tpu.core_type<tc>, window_params = [{transform_indices = @transform_0, window_bounds = array<i64: 16, 20>}, {pipeline_mode = #tpu.pipeline_mode<synchronous>, transform_indices = @transform_1, window_bounds = array<i64: 20, 32>}, {transform_indices = @transform_2, window_bounds = array<i64: 16, 32>}]} {
    %c0 = arith.constant 0 : index
    %c0_0 = arith.constant 0 : index
    %0 = vector.load %arg1[%c0, %c0_0] : memref<16x20xf32, #tpu.memory_space<vmem>>, vector<16x20xf32>
    %c0_1 = arith.constant 0 : index
    %c0_2 = arith.constant 0 : index
    %1 = vector.load %arg2[%c0_1, %c0_2] : memref<20x32xf32, #tpu.memory_space<vmem>>, vector<20x32xf32>
    %cst = arith.constant dense<0.000000e+00> : vector<16x32xf32>
    %2 = tpu.matmul %0, %1, %cst {dimension_numbers = #tpu.dot_dimension_numbers<[1], [0], [0], [1], [0, 0, 1, 1], [], []>} : vector<16x20xf32>, vector<20x32xf32>, vector<16x32xf32> -> vector<16x32xf32>
    %c0_3 = arith.constant 0 : index
    %c0_4 = arith.constant 0 : index
    %3 = vector.load %arg3[%c0_3, %c0_4] : memref<16x32xf32, #tpu.memory_space<vmem>>, vector<16x32xf32>
    tpu.vector_store %arg3[%c0_3, %c0_4], %2 {strides = array<i32>} : memref<16x32xf32, #tpu.memory_space<vmem>>, vector<16x32xf32>,
    return
  }
  func.func @transform_0(%arg0: i32) -> (i32, i32) {
    %c0_i32 = arith.constant 0 : i32
    %c0_i32_0 = arith.constant 0 : i32
    return %arg0, %c0_i32 : i32, i32
  }
  func.func @transform_1(%arg0: i32) -> (i32, i32) {
    %c0_i32 = arith.constant 0 : i32
    %c0_i32_0 = arith.constant 0 : i32
    %c0_i32_1 = arith.constant 0 : i32
    return %c0_i32, %c0_i32_0 : i32, i32
  }
  func.func @transform_2(%arg0: i32) -> (i32, i32) {
    %c0_i32 = arith.constant 0 : i32
    %c0_i32_0 = arith.constant 0 : i32
    return %arg0, %c0_i32 : i32, i32
  }
}

</mosaic_0001>

<llo_original>
// kernel: tpu_custom_call.1
$region0: #{tpu_custom_call.1}
  #allocation0 [shape = 'u32[]', space=smem, size = 0x4, offset = 0x4, fixed_abs, tag = 'smem constant byte address 0x4 - core index']
  #allocation1 [shape = 'u32[72,128]{1,0:T(1,128)}', space=vmem, size = 0x9000, scoped, tag = 'internal scratch']
  %s0 = inlined_call_operand.hbm [shape: f32[16,20], index: 0, kind: input, shape index: {}]
  %s1 = inlined_call_operand.hbm [shape: f32[20,32], index: 1, kind: input, shape index: {}]
  %s2 = inlined_call_operand.hbm [shape: f32[16,32], index: 2, kind: output, shape index: {}]
  %s3 = sld [smem:[#allocation0]]
  $region26: #{tpu_custom_call.1} parent=0
    _
  %s5 = ssub.s32 1, %s3
  %s6 = scalar_select 0, %s5, %s3
  $region1: #{tpu_custom_call.1} parent=0
    #allocation2 [shape = 'u8[8192]{0}', space=vmem, size = 0x2000, scoped, tag = 'input window, operand 0, single buffered']
    #allocation3 [shape = 's32[1]{0}', space=sflag, size = 0x4, scoped, tag = 'scoped memory for tpu_custom_call.1']
    #allocation4 [shape = 's32[1]{0}', space=sflag, size = 0x4, scoped, tag = 'scoped memory for tpu_custom_call.1']
    #allocation5 [shape = 'u8[12288]{0}', space=vmem, size = 0x3000, scoped, tag = 'input window, operand 1, single buffered']
    #allocation6 [shape = 's32[1]{0}', space=sflag, size = 0x4, scoped, tag = 'scoped memory for tpu_custom_call.1']
    #allocation7 [shape = 'u8[8192]{0}', space=vmem, size = 0x2000, scoped, tag = 'output window, operand 0, single buffered']
    %7 = vsyncpa [#allocation3], 0
    %8 = vsyncpa [#allocation6], 0
    %9 = vsyncpa [#allocation4], 0
    // Predicated region
    $region2: #{tpu_custom_call.1} parent=1 // pred_check
      _
    $region3: #{tpu_custom_call.1} parent=1 // pred_check_branch
      %11 = sbr.rel (0) target = $region5
    $region4: #{tpu_custom_call.1} parent=1 // pred_region
      %13 = vsyncadd [#allocation3], 0
      %s14 = sshll.u32 %s0, 4
      %s15 = int_to_ptr.hbm [resolvable:$true] %s14
      %s16 = sshll.u32 [#allocation2], 4
      %s17 = int_to_ptr.vmem [resolvable:$true] %s16
      %22 = dma.hbm_to_vmem [thread:$0]  %s15, 256, %s17, [#allocation3], 128, 128, 8
    $region5: #{tpu_custom_call.1} parent=1 // pred_fallthru
      _
    // Predicated region
    $region6: #{tpu_custom_call.1} parent=1 // pred_check
      _
    $region7: #{tpu_custom_call.1} parent=1 // pred_check_branch
      %24 = sbr.rel (0) target = $region9
    $region8: #{tpu_custom_call.1} parent=1 // pred_region
      %26 = vsyncadd [#allocation6], 0
      %s27 = sshll.u32 %s1, 4
      %s28 = int_to_ptr.hbm [resolvable:$true] %s27
      %s29 = sshll.u32 [#allocation5], 4
      %s30 = int_to_ptr.vmem [resolvable:$true] %s29
      %35 = dma.hbm_to_vmem [thread:$0]  %s28, 384, %s30, [#allocation6], 128, 128, 8
    $region9: #{tpu_custom_call.1} parent=1 // pred_fallthru
      _
    // Predicated region
    $region10: #{tpu_custom_call.1} parent=1 // pred_check
      _
    $region11: #{tpu_custom_call.1} parent=1 // pred_check_branch
      %37 = sbr.rel (0) target = $region13
    $region12: #{tpu_custom_call.1} parent=1 // pred_region
      %39 = dma.done [#allocation3], 256
    $region13: #{tpu_custom_call.1} parent=1 // pred_fallthru
      _
    // Predicated region
    $region14: #{tpu_custom_call.1} parent=1 // pred_check
      _
    $region15: #{tpu_custom_call.1} parent=1 // pred_check_branch
      %41 = sbr.rel (0) target = $region17
    $region16: #{tpu_custom_call.1} parent=1 // pred_region
      %43 = dma.done [#allocation6], 384
    $region17: #{tpu_custom_call.1} parent=1 // pred_fallthru
      _
    %v44 = vld [vmem:[#allocation2] sm:$0xff]
    %v45 = vld [vmem:[#allocation2 + $0x8] sm:$0xff]
    %v46 = vld [vmem:[#allocation5] sm:$0xff]
    %v47 = vld [vmem:[#allocation5 + $0x8] sm:$0xff]
    %v48 = vld [vmem:[#allocation5 + $0x10] sm:$0xf]
    %vm49 = vcmask 162816
    %v51 = vsel %vm49, %v44, 0
    %v54 = vsel %vm49, %v45, 0
    %vm56 = vcmask 1043456
    %v58 = vsel %vm56, %v48, 0
    %60 = vmatpush.msra.mxu0 0.0
    %61 = vmatpush.msra.mxu0 0.0
    %62 = vmatpush.msra.mxu0 0.0
    %63 = vmatpush.msra.mxu0 0.0
    %64 = vmatpush.msra.mxu0 0.0
    %65 = vmatpush.msra.mxu0 0.0
    %66 = vmatpush.msra.mxu0 0.0
    %67 = vmatpush.msra.mxu0 0.0
    %68 = vmatpush.msra.mxu0 0.0
    %69 = vmatpush.msra.mxu0 0.0
    %70 = vmatpush.msra.mxu0 0.0
    %71 = vmatpush.msra.mxu0 0.0
    %72 = vmatpush.msra.mxu0 0.0
    %73 = vmatpush.msra.mxu0 %v58
    %74 = vmatpush.msra.mxu0 %v47
    %75 = vmatpush.msra.mxu0 %v46
    %76 = vmatmul.f32.gmra.mxu0 %v51
    %v77 = vpop.f32.mrf.mxu0
    %v78 = vadd.f32 0.0, %v77
    %79 = vmatmul.f32.gmra.mxu0 %v54
    %v80 = vpop.f32.mrf.mxu0
    %v81 = vadd.f32 0.0, %v80
    %82 = vdwg.mxu0
    %vm83 = vcmask 261120
    %84 = vst.msk [vmem:[#allocation7] sm:$0xff] %vm83, %v78
    %85 = vst.msk [vmem:[#allocation7 + $0x8] sm:$0xff] %vm83, %v81
    // Predicated region
    $region18: #{tpu_custom_call.1} parent=1 // pred_check
      _
    $region19: #{tpu_custom_call.1} parent=1 // pred_check_branch
      %87 = sbr.rel (0) target = $region21
    $region20: #{tpu_custom_call.1} parent=1 // pred_region
      %89 = vsyncadd [#allocation4], 0
      %s90 = sshll.u32 [#allocation7], 4
      %s91 = int_to_ptr.vmem [resolvable:$true] %s90
      %s92 = sshll.u32 %s2, 4
      %s93 = int_to_ptr.hbm [resolvable:$true] %s92
      %98 = dma.vmem_to_hbm [thread:$0]  %s91, 256, %s93, [#allocation4], 128, 128, 8
    $region21: #{tpu_custom_call.1} parent=1 // pred_fallthru
      _
    // Predicated region
    $region22: #{tpu_custom_call.1} parent=1 // pred_check
      _
    $region23: #{tpu_custom_call.1} parent=1 // pred_check_branch
      %100 = sbr.rel (0) target = $region25
    $region24: #{tpu_custom_call.1} parent=1 // pred_region
      %102 = dma.done [#allocation4], 256
    $region25: #{tpu_custom_call.1} parent=1 // pred_fallthru
      _
    %103 = vsyncpa [#allocation3], 1
    %104 = vsyncpa [#allocation6], 1
    %105 = vsyncpa [#allocation4], 1

</llo_original>
